<compile_context>
chip_gen: v7x
topology: tpu7x:2x2x1
jax: 0.10.0
libtpu: 0.0.40
codegen_flags: <defaults>
</compile_context>

<pallas_src>
import jax
import jax.numpy as jnp
from jax.experimental import pallas as pl
from jax.experimental.pallas import tpu as pltpu


def _round_up(a, b):
    return (a + b - 1) // b * b


def deconv_bn_relu_kernel(x_ref, w_ref, scale_ref, shift_ref, o_ref):
    # One row-tile of the deconv-as-matmul, fused BN affine + ReLU, bf16 store.
    y = jnp.dot(x_ref[...], w_ref[...], preferred_element_type=jnp.float32)
    o_ref[...] = jnp.maximum(y * scale_ref[...] + shift_ref[...], 0.0).astype(o_ref.dtype)


def deconv_block_forward(x, weight, bias, gamma, beta, eps=1e-5, tile_r=4096):
    del bias  # per-channel conv bias cancels exactly under training-mode BatchNorm
    N, Cin, D, H, W = x.shape
    Cin_w, Cout, kD, kH, kW = weight.shape
    assert (kD, kH, kW) == (2, 2, 1) and Cin_w == Cin
    C4 = Cout * kD * kH                        # matmul columns per input position

    # ---- lane folding: fold W into the lane axis when C4 alone is not lane-dense -------
    fold = 1
    if C4 % 128 != 0:
        cand = W                               # kW == 1, so W is untouched by the conv
        if Cin * cand <= 2048 and (Cin * cand) * _round_up(C4 * cand, 128) * 2 <= (2 << 20):
            fold = cand
    Wo = W // fold
    R = N * D * H * Wo                         # matmul rows
    CinF = Cin * fold                          # contraction dim
    L = C4 * fold                              # real output columns
    Lp = _round_up(L, 128)                     # lane-dense output columns

    # glue: NCDHW -> (N, D, H, Wo, Cin, fold) -> (R, CinF), bf16 for the MXU
    x2 = (x.reshape(N, Cin, D, H, Wo, fold)
            .transpose(0, 2, 3, 4, 1, 5)
            .reshape(R, CinF)
            .astype(jnp.bfloat16))

    # block-diagonal weight: Wb[(ci,f'), (c,f)] = w[ci,c] * (f==f'); columns = (cout,kd,kh,f)
    w_col = weight.reshape(Cin, C4).astype(jnp.bfloat16).astype(jnp.float32)  # bf16-rounded
    eye_f = jnp.eye(fold, dtype=jnp.float32)
    w_block = (w_col[:, None, :, None] * eye_f[None, :, None, :]).reshape(CinF, L)
    w_block_p = jnp.pad(w_block, ((0, 0), (0, Lp - L))).astype(jnp.bfloat16)

    # ---- tile sizing: big tiles (amortize grid-step overhead), capped for VMEM ----------
    tile_r = max(8, min(int(tile_r), _round_up(R, 8)))
    bytes_per_row = 2 * (CinF + Lp)            # bf16 x row + bf16 out row (double-buffered)
    budget = 24 * 1024 * 1024                  # headroom under 32 MiB scoped / 64 MiB v7x
    max_tile_r = max(8, ((budget // 2) // bytes_per_row) // 8 * 8)
    tile_r = min(tile_r, max_tile_r)
    nt = -(-R // tile_r)
    tile_r = _round_up(-(-R // nt), 8)         # balanced tiles, padding <= 8*nt rows
    R_pad = nt * tile_r
    if R_pad > R:
        x2 = jnp.pad(x2, ((0, R_pad - R), (0, 0)))

    # ---- X-side batch statistics (Gram trick), tiny XLA matmuls -------------------------
    # col_sq_j = sum_p Wb[p,j] * (G @ Wb)[p,j]  == sum_rows y[:,j]^2 without forming y.
    G = jnp.einsum('ri,rj->ij', x2, x2, preferred_element_type=jnp.float32)   # (CinF,CinF)
    s = jnp.sum(x2.astype(jnp.float32), axis=0)                               # (CinF,)
    col_sum = s @ w_block                                                     # (L,)
    col_sq = jnp.einsum('pj,pj->j', w_block, G @ w_block)                     # (L,)
    per_ch = kD * kH * fold
    per_ch_sum = col_sum.reshape(Cout, per_ch).sum(-1)
    per_ch_sq = col_sq.reshape(Cout, per_ch).sum(-1)
    count = jnp.float32(R * per_ch)            # = N * D' * H' * W' (true rows; pad rows = 0)
    mean = per_ch_sum / count
    # NOTE: E[y^2]-E[y]^2 in f32 — cancellation possible if |mean| >> std (documented).
    var = jnp.maximum(per_ch_sq / count - mean * mean, 0.0)
    inv_std = jax.lax.rsqrt(var + eps)
    scale_c = gamma.astype(jnp.float32) * inv_std
    shift_c = beta.astype(jnp.float32) - mean * scale_c
    scale = jnp.pad(jnp.repeat(scale_c, per_ch)[None, :], ((0, 0), (0, Lp - L)))
    shift = jnp.pad(jnp.repeat(shift_c, per_ch)[None, :], ((0, 0), (0, Lp - L)))

    # ---- fused deconv-matmul + BN affine + ReLU, bf16 lane-dense output -----------------
    out2 = pl.pallas_call(
        deconv_bn_relu_kernel,
        out_shape=jax.ShapeDtypeStruct((R_pad, Lp), jnp.bfloat16),
        grid=(nt,),
        in_specs=[pl.BlockSpec((tile_r, CinF), lambda i: (i, 0)),
                  pl.BlockSpec((CinF, Lp), lambda i: (0, 0)),
                  pl.BlockSpec((1, Lp), lambda i: (0, 0)),
                  pl.BlockSpec((1, Lp), lambda i: (0, 0))],
        out_specs=pl.BlockSpec((tile_r, Lp), lambda i: (i, 0)),
        compiler_params=pltpu.CompilerParams(dimension_semantics=("parallel",)),
    )(x2, w_block_p, scale, shift)

    # ---- epilogue: columns (cout,kd,kh,f) scatter back to NCD'H'W (one fused transpose) --
    out = out2[:R, :L].reshape(N, D, H, Wo, Cout, kD, kH, fold).astype(jnp.float32)
    out = jnp.transpose(out, (0, 4, 1, 5, 2, 6, 3, 7))     # -> (N,Cout,D,kD,H,kH,Wo,fold)
    return out.reshape(N, Cout, D * kD, H * kH, W)


def reference_forward(x, weight, bias, gamma, beta, eps=1e-5):
    # Pure-JAX reference of the PyTorch module (training-mode BN).
    N, Cin, D, H, W = x.shape
    _, Cout, kD, kH, _ = weight.shape
    y = jnp.einsum('ncdhw,cokij->nodkhiw', x, weight)   # kw=1 summed away
    y = y.reshape(N, Cout, D * kD, H * kH, W) + bias[None, :, None, None, None]
    mean = y.mean(axis=(0, 2, 3, 4), keepdims=True)
    var = ((y - mean) ** 2).mean(axis=(0, 2, 3, 4), keepdims=True)  # biased
    yn = (y - mean) / jnp.sqrt(var + eps)
    yn = yn * gamma[None, :, None, None, None] + beta[None, :, None, None, None]
    return jnp.maximum(yn, 0.0)


if __name__ == "__main__":
    key = jax.random.PRNGKey(0)
    N, Cin, Cout = 2, 4, 8
    D, H, W = 8, 8, 4   # input spatial; output spatial will be (16, 16, 4)

    kx, kw = jax.random.split(key)
    x = jax.random.normal(kx, (N, Cin, D, H, W), dtype=jnp.float32)

    # ConvTranspose3d weight: (Cin, Cout, 2, 2, 1), kaiming_normal_ (fan_in = Cout*2*2*1)
    fan_in = Cout * 2 * 2 * 1
    w_std = (2.0 / fan_in) ** 0.5
    weight = w_std * jax.random.normal(kw, (Cin, Cout, 2, 2, 1), dtype=jnp.float32)
    bias = jnp.zeros((Cout,), dtype=jnp.float32)   # bias zeroed in __init__
    gamma = jnp.ones((Cout,), dtype=jnp.float32)   # bn.weight = 1
    beta = jnp.zeros((Cout,), dtype=jnp.float32)   # bn.bias = 0

    fwd = jax.jit(deconv_block_forward)
    out = jax.block_until_ready(fwd(x, weight, bias, gamma, beta))
    assert out.shape == (N, Cout, 2 * D, 2 * H, W)

    # reference evaluated on bf16-rounded inputs (kernel uses bf16 x/w, f32 accumulation,
    # bf16 store), so compare with a tolerance that covers the bf16 output rounding.
    x_bf = x.astype(jnp.bfloat16).astype(jnp.float32)
    w_bf = weight.astype(jnp.bfloat16).astype(jnp.float32)
    ref = reference_forward(x_bf, w_bf, bias, gamma, beta)
    assert jnp.allclose(out, ref, atol=3e-2, rtol=3e-2)

    print("KERNEL_OK")
</pallas_src>

<mosaic_0001>
module attributes {stable_mosaic.version = 11 : i64} {
  func.func @deconv_bn_relu_kernel(%arg0: i32, %arg1: memref<128x16xbf16, #tpu.memory_space<vmem>>, %arg2: memref<16x128xbf16, #tpu.memory_space<vmem>>, %arg3: memref<1x128xf32, #tpu.memory_space<vmem>>, %arg4: memref<1x128xf32, #tpu.memory_space<vmem>>, %arg5: memref<128x128xbf16, #tpu.memory_space<vmem>>) attributes {dimension_semantics = [#tpu.dimension_semantics<parallel>], iteration_bounds = array<i64: 1>, scalar_prefetch = 0 : i64, scratch_operands = 0 : i64, tpu.core_type = #tpu.core_type<tc>, window_params = [{transform_indices = @transform_0, window_bounds = array<i64: 128, 16>}, {pipeline_mode = #tpu.pipeline_mode<synchronous>, transform_indices = @transform_1, window_bounds = array<i64: 16, 128>}, {pipeline_mode = #tpu.pipeline_mode<synchronous>, transform_indices = @transform_2, window_bounds = array<i64: 1, 128>}, {pipeline_mode = #tpu.pipeline_mode<synchronous>, transform_indices = @transform_3, window_bounds = array<i64: 1, 128>}, {transform_indices = @transform_4, window_bounds = array<i64: 128, 128>}]} {
    %c0 = arith.constant 0 : index
    %c0_0 = arith.constant 0 : index
    %0 = vector.load %arg1[%c0, %c0_0] : memref<128x16xbf16, #tpu.memory_space<vmem>>, vector<128x16xbf16>
    %c0_1 = arith.constant 0 : index
    %c0_2 = arith.constant 0 : index
    %1 = vector.load %arg2[%c0_1, %c0_2] : memref<16x128xbf16, #tpu.memory_space<vmem>>, vector<16x128xbf16>
    %cst = arith.constant dense<0.000000e+00> : vector<128x128xf32>
    %2 = tpu.matmul %0, %1, %cst {dimension_numbers = #tpu.dot_dimension_numbers<[1], [0], [0], [1], [0, 0, 1, 1], [], []>} : vector<128x16xbf16>, vector<16x128xbf16>, vector<128x128xf32> -> vector<128x128xf32>
    %c0_3 = arith.constant 0 : index
    %c0_4 = arith.constant 0 : index
    %3 = vector.load %arg3[%c0_3, %c0_4] : memref<1x128xf32, #tpu.memory_space<vmem>>, vector<1x128xf32>
    %4 = vector.broadcast %3 : vector<1x128xf32> to vector<128x128xf32>
    %5 = arith.mulf %2, %4 : vector<128x128xf32>
    %c0_5 = arith.constant 0 : index
    %c0_6 = arith.constant 0 : index
    %6 = vector.load %arg4[%c0_5, %c0_6] : memref<1x128xf32, #tpu.memory_space<vmem>>, vector<1x128xf32>
    %7 = vector.broadcast %6 : vector<1x128xf32> to vector<128x128xf32>
    %8 = arith.addf %5, %7 : vector<128x128xf32>
    %cst_7 = arith.constant 0.000000e+00 : f32
    %9 = vector.broadcast %cst_7 : f32 to vector<128x128xf32>
    %10 = arith.maximumf %8, %9 : vector<128x128xf32>
    %11 = arith.truncf %10 : vector<128x128xf32> to vector<128x128xbf16>
    %c0_8 = arith.constant 0 : index
    %c0_9 = arith.constant 0 : index
    %12 = vector.load %arg5[%c0_8, %c0_9] : memref<128x128xbf16, #tpu.memory_space<vmem>>, vector<128x128xbf16>
    tpu.vector_store %arg5[%c0_8, %c0_9], %11 {strides = array<i32>} : memref<128x128xbf16, #tpu.memory_space<vmem>>, vector<128x128xbf16>,
    return
  }
  func.func @transform_0(%arg0: i32) -> (i32, i32) {
    %c0_i32 = arith.constant 0 : i32
    %c0_i32_0 = arith.constant 0 : i32
    return %arg0, %c0_i32 : i32, i32
  }
  func.func @transform_1(%arg0: i32) -> (i32, i32) {
    %c0_i32 = arith.constant 0 : i32
    %c0_i32_0 = arith.constant 0 : i32
    %c0_i32_1 = arith.constant 0 : i32
    return %c0_i32, %c0_i32_0 : i32, i32
  }
  func.func @transform_2(%arg0: i32) -> (i32, i32) {
    %c0_i32 = arith.constant 0 : i32
    %c0_i32_0 = arith.constant 0 : i32
    %c0_i32_1 = arith.constant 0 : i32
    return %c0_i32, %c0_i32_0 : i32, i32
  }
  func.func @transform_3(%arg0: i32) -> (i32, i32) {
    %c0_i32 = arith.constant 0 : i32
    %c0_i32_0 = arith.constant 0 : i32
    %c0_i32_1 = arith.constant 0 : i32
    return %c0_i32, %c0_i32_0 : i32, i32
  }
  func.func @transform_4(%arg0: i32) -> (i32, i32) {
    %c0_i32 = arith.constant 0 : i32
    %c0_i32_0 = arith.constant 0 : i32
    return %arg0, %c0_i32 : i32, i32
  }
}

</mosaic_0001>

<llo_original>
// kernel: deconv_block_forward.1
$region0: #{deconv_block_forward.1}
  #allocation0 [shape = 'u32[]', space=smem, size = 0x4, offset = 0x4, fixed_abs, tag = 'smem constant byte address 0x4 - core index']
  #allocation1 [shape = 'u32[144,128]{1,0:T(1,128)}', space=vmem, size = 0x12000, scoped, tag = 'internal scratch']
  %s0 = inlined_call_operand.vmem [shape: bf16[128,16], index: 0, kind: input, shape index: {}]
  %s1 = inlined_call_operand.vmem [shape: bf16[16,128], index: 1, kind: input, shape index: {}]
  %s2 = inlined_call_operand.vmem [shape: f32[1,128], index: 2, kind: input, shape index: {}]
  %s3 = inlined_call_operand.vmem [shape: f32[1,128], index: 3, kind: input, shape index: {}]
  %s4 = inlined_call_operand.vmem [shape: bf16[128,128], index: 4, kind: output, shape index: {}]
  %s5 = sld [smem:[#allocation0]]
  $region26: #{deconv_block_forward.1} parent=0
    _
  %s7 = ssub.s32 1, %s5
  %s8 = scalar_select 0, %s7, %s5
  // Predicated region
  $region2: #{deconv_block_forward.1} parent=0 // pred_check
    _
  $region3: #{deconv_block_forward.1} parent=0 // pred_check_branch
    %10 = sbr.rel (0) target = $region5
  $region4: #{deconv_block_forward.1} parent=0 // pred_region
    _
  $region5: #{deconv_block_forward.1} parent=0 // pred_fallthru
    _
  // Predicated region
  $region6: #{deconv_block_forward.1} parent=0 // pred_check
    _
  $region7: #{deconv_block_forward.1} parent=0 // pred_check_branch
    %12 = sbr.rel (0) target = $region9
  $region8: #{deconv_block_forward.1} parent=0 // pred_region
    _
  $region9: #{deconv_block_forward.1} parent=0 // pred_fallthru
    _
  // Predicated region
  $region10: #{deconv_block_forward.1} parent=0 // pred_check
    _
  $region11: #{deconv_block_forward.1} parent=0 // pred_check_branch
    %14 = sbr.rel (0) target = $region13
  $region12: #{deconv_block_forward.1} parent=0 // pred_region
    _
  $region13: #{deconv_block_forward.1} parent=0 // pred_fallthru
    _
  // Predicated region
  $region14: #{deconv_block_forward.1} parent=0 // pred_check
    _
  $region15: #{deconv_block_forward.1} parent=0 // pred_check_branch
    %16 = sbr.rel (0) target = $region17
  $region16: #{deconv_block_forward.1} parent=0 // pred_region
    _
  $region17: #{deconv_block_forward.1} parent=0 // pred_fallthru
    _
  %v18 = vld [vmem:[%s0] sm:$0xf]
  %v19 = vld [vmem:[%s0 + $0x4] sm:$0xf]
  %v20 = vld [vmem:[%s0 + $0x8] sm:$0xf]
  %v21 = vld [vmem:[%s0 + $0xc] sm:$0xf]
  %v22 = vld [vmem:[%s0 + $0x10] sm:$0xf]
  %v23 = vld [vmem:[%s0 + $0x14] sm:$0xf]
  %v24 = vld [vmem:[%s0 + $0x18] sm:$0xf]
  %v25 = vld [vmem:[%s0 + $0x1c] sm:$0xf]
  %v26 = vld [vmem:[%s0 + $0x20] sm:$0xf]
  %v27 = vld [vmem:[%s0 + $0x24] sm:$0xf]
  %v28 = vld [vmem:[%s0 + $0x28] sm:$0xf]
  %v29 = vld [vmem:[%s0 + $0x2c] sm:$0xf]
  %v30 = vld [vmem:[%s0 + $0x30] sm:$0xf]
  %v31 = vld [vmem:[%s0 + $0x34] sm:$0xf]
  %v32 = vld [vmem:[%s0 + $0x38] sm:$0xf]
  %v33 = vld [vmem:[%s0 + $0x3c] sm:$0xf]
  %v34 = vld [vmem:[%s1] sm:$0xf]
  %v35 = vld [vmem:[%s1 + $0x4] sm:$0xf]
  %v52 = vunpack.c.l.b16 %v18
  %v53 = vunpack.c.l.b16 %v19
  %v54 = vunpack.c.l.b16 %v20
  %v55 = vunpack.c.l.b16 %v21
  %v56 = vunpack.c.l.b16 %v22
  %v57 = vunpack.c.l.b16 %v23
  %v58 = vunpack.c.l.b16 %v24
  %v59 = vunpack.c.l.b16 %v25
  %v60 = vunpack.c.l.b16 %v26
  %v61 = vunpack.c.l.b16 %v27
  %v62 = vunpack.c.l.b16 %v28
  %v63 = vunpack.c.l.b16 %v29
  %v64 = vunpack.c.l.b16 %v30
  %v65 = vunpack.c.l.b16 %v31
  %v66 = vunpack.c.l.b16 %v32
  %v67 = vunpack.c.l.b16 %v33
  %v68 = vpack.c.b16 %v53, %v52
  %v69 = vpack.c.b16 %v55, %v54
  %v70 = vpack.c.b16 %v57, %v56
  %v71 = vpack.c.b16 %v59, %v58
  %v72 = vpack.c.b16 %v61, %v60
  %v73 = vpack.c.b16 %v63, %v62
  %v74 = vpack.c.b16 %v65, %v64
  %v75 = vpack.c.b16 %v67, %v66
  %v78 = vunpack.c.l.b16 %v34
  %v79 = vunpack.c.l.b16 %v35
  %v80 = vpack.c.b16 %v79, %v78
  %vm82 = vcmask 130048
  %v84 = vsel %vm82, %v68, 0
  %v87 = vsel %vm82, %v69, 0
  %v90 = vsel %vm82, %v70, 0
  %v93 = vsel %vm82, %v71, 0
  %v96 = vsel %vm82, %v72, 0
  %v99 = vsel %vm82, %v73, 0
  %v102 = vsel %vm82, %v74, 0
  %v105 = vsel %vm82, %v75, 0
  %107 = vmatprep.subr.bf16.mxu0 0
  %108 = vmatpush1.bf16.msra.mxu0 %v80
  %109 = vmatprep.subr.bf16.mxu0 0
  %110 = vmatpush1.bf16.msra.mxu0 0
  %111 = vmatprep.subr.bf16.mxu0 0
  %112 = vmatpush1.bf16.msra.mxu0 0
  %113 = vmatprep.subr.bf16.mxu0 0
  %114 = vmatpush1.bf16.msra.mxu0 0
  %115 = vmatprep.subr.bf16.mxu0 0
  %116 = vmatpush1.bf16.msra.mxu0 0
  %117 = vmatprep.subr.bf16.mxu0 0
  %118 = vmatpush1.bf16.msra.mxu0 0
  %119 = vmatprep.subr.bf16.mxu0 0
  %120 = vmatpush1.bf16.msra.mxu0 0
  %121 = vmatprep.subr.bf16.mxu0 0
  %122 = vmatpush1.bf16.msra.mxu0 0
  %123 = vmatprep.subr.bf16.mxu0 0
  %124 = vmatpush1.bf16.msra.mxu0 0
  %125 = vmatprep.subr.bf16.mxu0 0
  %126 = vmatpush1.bf16.msra.mxu0 0
  %127 = vmatprep.subr.bf16.mxu0 0
  %128 = vmatpush1.bf16.msra.mxu0 0
  %129 = vmatprep.subr.bf16.mxu0 0
  %130 = vmatpush1.bf16.msra.mxu0 0
  %131 = vmatprep.subr.bf16.mxu0 0
  %132 = vmatpush1.bf16.msra.mxu0 0
  %133 = vmatprep.subr.bf16.mxu0 0
  %134 = vmatpush1.bf16.msra.mxu0 0
  %135 = vmatprep.subr.bf16.mxu0 0
  %136 = vmatpush1.bf16.msra.mxu0 0
  %137 = vmatprep.subr.bf16.mxu0 0
  %138 = vmatpush1.bf16.msra.mxu0 0
  %139 = vmatprep.mubr.bf16.mxu0 0
  %140 = vmatmul.mubr.bf16.gmra.mrb[0].mxu0 %v84
  %v141 = vpop.f32.mrb[0].mxu0
  %v142 = vadd.f32 0.0, %v141
  %v143 = vpop.f32.mrb[0].mxu0
  %v144 = vpop.f32.mrb[0].mxu0
  %v145 = vadd.f32 0.0, %v144
  %v146 = vpop.f32.mrb[0].mxu0
  %147 = vmatprep.mubr.bf16.mxu0 0
  %148 = vmatmul.mubr.bf16.gmra.mrb[0].mxu0 %v87
  %v149 = vpop.f32.mrb[0].mxu0
  %v150 = vadd.f32 0.0, %v149
  %v151 = vpop.f32.mrb[0].mxu0
  %v152 = vpop.f32.mrb[0].mxu0
  %v153 = vadd.f32 0.0, %v152
  %v154 = vpop.f32.mrb[0].mxu0
  %155 = vmatprep.mubr.bf16.mxu0 0
  %156 = vmatmul.mubr.bf16.gmra.mrb[0].mxu0 %v90
  %v157 = vpop.f32.mrb[0].mxu0
  %v158 = vadd.f32 0.0, %v157
  %v159 = vpop.f32.mrb[0].mxu0
  %v160 = vpop.f32.mrb[0].mxu0
  %v161 = vadd.f32 0.0, %v160
  %v162 = vpop.f32.mrb[0].mxu0
  %163 = vmatprep.mubr.bf16.mxu0 0
  %164 = vmatmul.mubr.bf16.gmra.mrb[0].mxu0 %v93
  %v165 = vpop.f32.mrb[0].mxu0
  %v166 = vadd.f32 0.0, %v165
  %v167 = vpop.f32.mrb[0].mxu0
  %v168 = vpop.f32.mrb[0].mxu0
  %v169 = vadd.f32 0.0, %v168
  %v170 = vpop.f32.mrb[0].mxu0
  %171 = vmatprep.mubr.bf16.mxu0 0
  %172 = vmatmul.mubr.bf16.gmra.mrb[0].mxu0 %v96
  %v173 = vpop.f32.mrb[0].mxu0
  %v174 = vadd.f32 0.0, %v173
  %v175 = vpop.f32.mrb[0].mxu0
  %v176 = vpop.f32.mrb[0].mxu0
  %v177 = vadd.f32 0.0, %v176
  %v178 = vpop.f32.mrb[0].mxu0
  %179 = vmatprep.mubr.bf16.mxu0 0
  %180 = vmatmul.mubr.bf16.gmra.mrb[0].mxu0 %v99
  %v181 = vpop.f32.mrb[0].mxu0
  %v182 = vadd.f32 0.0, %v181
  %v183 = vpop.f32.mrb[0].mxu0
  %v184 = vpop.f32.mrb[0].mxu0
  %v185 = vadd.f32 0.0, %v184
  %v186 = vpop.f32.mrb[0].mxu0
  %187 = vmatprep.mubr.bf16.mxu0 0
  %188 = vmatmul.mubr.bf16.gmra.mrb[0].mxu0 %v102
  %v189 = vpop.f32.mrb[0].mxu0
  %v190 = vadd.f32 0.0, %v189
  %v191 = vpop.f32.mrb[0].mxu0
  %v192 = vpop.f32.mrb[0].mxu0
  %v193 = vadd.f32 0.0, %v192
  %v194 = vpop.f32.mrb[0].mxu0
  %195 = vmatprep.mubr.bf16.mxu0 0
  %196 = vmatmul.mubr.bf16.gmra.mrb[0].mxu0 %v105
  %v197 = vpop.f32.mrb[0].mxu0
  %v198 = vadd.f32 0.0, %v197
  %v199 = vpop.f32.mrb[0].mxu0
  %v200 = vpop.f32.mrb[0].mxu0
  %v201 = vadd.f32 0.0, %v200
  %v202 = vpop.f32.mrb[0].mxu0
  %203 = vdwg.mxu0
  %v204 = vld [vmem:[%s2] sm:$0x1]
  %v206 = vlaneseq
  %v207 = vshrl.u32 %v206, 7
  %v208 = vsub.s32 0, %v207
  %v209 = vrot.slane %v204, %v208
  %v211 = vmul.f32 %v142, %v209
  %v212 = vmul.f32 %v145, %v209
  %v213 = vmul.f32 %v150, %v209
  %v214 = vmul.f32 %v153, %v209
  %v215 = vmul.f32 %v158, %v209
  %v216 = vmul.f32 %v161, %v209
  %v217 = vmul.f32 %v166, %v209
  %v218 = vmul.f32 %v169, %v209
  %v219 = vmul.f32 %v174, %v209
  %v220 = vmul.f32 %v177, %v209
  %v221 = vmul.f32 %v182, %v209
  %v222 = vmul.f32 %v185, %v209
  %v223 = vmul.f32 %v190, %v209
  %v224 = vmul.f32 %v193, %v209
  %v225 = vmul.f32 %v198, %v209
  %v226 = vmul.f32 %v201, %v209
  %v227 = vld [vmem:[%s3] sm:$0x1]
  %v229 = vlaneseq
  %v230 = vshrl.u32 %v229, 7
  %v231 = vsub.s32 0, %v230
  %v232 = vrot.slane %v227, %v231
  %v234 = vadd.f32 %v211, %v232
  %v235 = vadd.f32 %v212, %v232
  %v236 = vadd.f32 %v213, %v232
  %v237 = vadd.f32 %v214, %v232
  %v238 = vadd.f32 %v215, %v232
  %v239 = vadd.f32 %v216, %v232
  %v240 = vadd.f32 %v217, %v232
  %v241 = vadd.f32 %v218, %v232
  %v242 = vadd.f32 %v219, %v232
  %v243 = vadd.f32 %v220, %v232
  %v244 = vadd.f32 %v221, %v232
  %v245 = vadd.f32 %v222, %v232
  %v246 = vadd.f32 %v223, %v232
  %v247 = vadd.f32 %v224, %v232
  %v248 = vadd.f32 %v225, %v232
  %v249 = vadd.f32 %v226, %v232
  %v250 = vmax.f32 %v234, 0.0
  %v251 = vmax.f32 %v235, 0.0
  %v252 = vmax.f32 %v236, 0.0
  %v253 = vmax.f32 %v237, 0.0
  %v254 = vmax.f32 %v238, 0.0
  %v255 = vmax.f32 %v239, 0.0
  %v256 = vmax.f32 %v240, 0.0
  %v257 = vmax.f32 %v241, 0.0
  %v258 = vmax.f32 %v242, 0.0
  %v259 = vmax.f32 %v243, 0.0
  %v260 = vmax.f32 %v244, 0.0
  %v261 = vmax.f32 %v245, 0.0
  %v262 = vmax.f32 %v246, 0.0
  %v263 = vmax.f32 %v247, 0.0
  %v264 = vmax.f32 %v248, 0.0
  %v265 = vmax.f32 %v249, 0.0
  %v266 = vpack.c.bf16 %v251, %v250
  %v267 = vpack.c.bf16 %v253, %v252
  %v268 = vpack.c.bf16 %v255, %v254
  %v269 = vpack.c.bf16 %v257, %v256
  %v270 = vpack.c.bf16 %v259, %v258
  %v271 = vpack.c.bf16 %v261, %v260
  %v272 = vpack.c.bf16 %v263, %v262
  %v273 = vpack.c.bf16 %v265, %v264
  %v282 = vunpack.c.l.b16 %v266
  %v283 = vunpack.c.h.b16 %v266
  %v284 = vunpack.c.l.b16 %v267
  %v285 = vunpack.c.h.b16 %v267
  %v286 = vunpack.c.l.b16 %v268
  %v287 = vunpack.c.h.b16 %v268
  %v288 = vunpack.c.l.b16 %v269
  %v289 = vunpack.c.h.b16 %v269
  %v290 = vunpack.c.l.b16 %v270
  %v291 = vunpack.c.h.b16 %v270
  %v292 = vunpack.c.l.b16 %v271
  %v293 = vunpack.c.h.b16 %v271
  %v294 = vunpack.c.l.b16 %v272
  %v295 = vunpack.c.h.b16 %v272
  %v296 = vunpack.c.l.b16 %v273
  %v297 = vunpack.c.h.b16 %v273
  %v298 = vpack.c.b16 %v282, %v282
  %v299 = vpack.c.b16 %v283, %v283
  %v300 = vpack.c.b16 %v284, %v284
  %v301 = vpack.c.b16 %v285, %v285
  %v302 = vpack.c.b16 %v286, %v286
  %v303 = vpack.c.b16 %v287, %v287
  %v304 = vpack.c.b16 %v288, %v288
  %v305 = vpack.c.b16 %v289, %v289
  %v306 = vpack.c.b16 %v290, %v290
  %v307 = vpack.c.b16 %v291, %v291
  %v308 = vpack.c.b16 %v292, %v292
  %v309 = vpack.c.b16 %v293, %v293
  %v310 = vpack.c.b16 %v294, %v294
  %v311 = vpack.c.b16 %v295, %v295
  %v312 = vpack.c.b16 %v296, %v296
  %v313 = vpack.c.b16 %v297, %v297
  %330 = vst [vmem:[%s4] sm:$0xf] %v298
  %331 = vst [vmem:[%s4 + $0x4] sm:$0xf] %v299
  %332 = vst [vmem:[%s4 + $0x8] sm:$0xf] %v300
  %333 = vst [vmem:[%s4 + $0xc] sm:$0xf] %v301
  %334 = vst [vmem:[%s4 + $0x10] sm:$0xf] %v302
  %335 = vst [vmem:[%s4 + $0x14] sm:$0xf] %v303
  %336 = vst [vmem:[%s4 + $0x18] sm:$0xf] %v304
  %337 = vst [vmem:[%s4 + $0x1c] sm:$0xf] %v305
  %338 = vst [vmem:[%s4 + $0x20] sm:$0xf] %v306
  %339 = vst [vmem:[%s4 + $0x24] sm:$0xf] %v307
  %340 = vst [vmem:[%s4 + $0x28] sm:$0xf] %v308
  %341 = vst [vmem:[%s4 + $0x2c] sm:$0xf] %v309
  %342 = vst [vmem:[%s4 + $0x30] sm:$0xf] %v310
  %343 = vst [vmem:[%s4 + $0x34] sm:$0xf] %v311
  %344 = vst [vmem:[%s4 + $0x38] sm:$0xf] %v312
  %345 = vst [vmem:[%s4 + $0x3c] sm:$0xf] %v313
  // Predicated region
  $region18: #{deconv_block_forward.1} parent=0 // pred_check
    _
  $region19: #{deconv_block_forward.1} parent=0 // pred_check_branch
    %347 = sbr.rel (0) target = $region21
  $region20: #{deconv_block_forward.1} parent=0 // pred_region
    _
  $region21: #{deconv_block_forward.1} parent=0 // pred_fallthru
    _
  // Predicated region
  $region22: #{deconv_block_forward.1} parent=0 // pred_check
    _
  $region23: #{deconv_block_forward.1} parent=0 // pred_check_branch
    %349 = sbr.rel (0) target = $region25
  $region24: #{deconv_block_forward.1} parent=0 // pred_region
    _
  $region25: #{deconv_block_forward.1} parent=0 // pred_fallthru
    _

</llo_original>
